<compile_context>
chip_gen: v7x
topology: tpu7x:2x2x1
jax: 0.10.0
libtpu: 0.0.40
codegen_flags: <defaults>
</compile_context>

<pallas_src>
import jax
import jax.numpy as jnp
from jax.experimental import pallas as pl
from jax.experimental.pallas import tpu as pltpu


def _masked_fill_kernel(x_ref, m_ref, o_ref):
    """o = where(mask != 0, -inf, x).  m_ref is (1, feat) or (tile_r, feat);
    the (1, feat) case broadcasts over the tile's rows (one cheap sublane
    broadcast per tile, negligible next to the HBM stream)."""
    neg_inf = jnp.array(-jnp.inf, dtype=x_ref.dtype)
    o_ref[...] = jnp.where(m_ref[...] != 0, neg_inf, x_ref[...])


def _pick_tile_rows(rows: int, feat: int, itemsize: int) -> int:
    """~2 MiB x-blocks. With x + mask + out each double-buffered this stays
    comfortably under v5e's 16 MiB default scoped VMEM (and far under
    v6e/v7x budgets). Tile is a multiple of 8 sublanes, or the full row
    extent (both are legal block shapes)."""
    target_bytes = 2 * 1024 * 1024
    per_row = max(1, feat * itemsize)
    t = max(8, (target_bytes // per_row) // 8 * 8)
    return int(min(t, rows))


def _masked_fill_2d(x2, m2, *, row_broadcast: bool):
    rows, feat = x2.shape
    tile_r = _pick_tile_rows(rows, feat, x2.dtype.itemsize)
    grid = (pl.cdiv(rows, tile_r),)

    x_spec = pl.BlockSpec((tile_r, feat), lambda i: (i, 0))
    if row_broadcast:
        # The same (1, feat) mask block is reused by every row tile.
        m_spec = pl.BlockSpec((1, feat), lambda i: (0, 0))
    else:
        m_spec = pl.BlockSpec((tile_r, feat), lambda i: (i, 0))

    return pl.pallas_call(
        _masked_fill_kernel,
        out_shape=jax.ShapeDtypeStruct(x2.shape, x2.dtype),
        grid=grid,
        in_specs=[x_spec, m_spec],
        out_specs=pl.BlockSpec((tile_r, feat), lambda i: (i, 0)),
        compiler_params=pltpu.CompilerParams(
            dimension_semantics=("parallel",)),
        cost_estimate=pl.CostEstimate(
            flops=rows * feat,
            transcendentals=0,
            bytes_accessed=2 * x2.size * x2.dtype.itemsize
            + m2.size * m2.dtype.itemsize),
    )(x2, m2)


def log_dropout_m(x, annihilate_mask=None, *, p: float, training: bool = True):
    """Pallas implementation of LogDropoutM.forward."""
    # Identity in every branch except (training and p > 0 and mask given).
    if not (training and p > 0 and annihilate_mask is not None):
        return x

    if not jnp.issubdtype(x.dtype, jnp.floating):
        raise TypeError("LogDropoutM needs a floating-point input for -inf fill")

    annihilate_mask = jnp.asarray(annihilate_mask)
    if annihilate_mask.ndim > x.ndim:
        raise ValueError("annihilate_mask has more dims than x")

    n = x.ndim
    aligned = (1,) * (n - annihilate_mask.ndim) + tuple(annihilate_mask.shape)
    # torch.expand legality: every aligned dim is 1 or equal to x's dim.
    for a, d in zip(aligned, x.shape):
        if a != 1 and a != d:
            raise ValueError(
                f"mask shape {annihilate_mask.shape} is not expandable to {x.shape}")

    # Largest suffix where the aligned mask matches x exactly; if all leading
    # aligned dims are 1 the mask is row-invariant once the leading dims are
    # flattened -> cheap (1, inner) broadcast path (no full mask in HBM).
    k = n
    while k > 0 and aligned[k - 1] == x.shape[k - 1]:
        k -= 1
    row_broadcast = (0 < k < n) and all(d == 1 for d in aligned[:k])

    orig_shape = x.shape
    if row_broadcast:
        inner = 1
        for d in x.shape[k:]:
            inner *= int(d)
        rows = x.size // max(inner, 1)
        x2 = x.reshape(rows, inner)
        m2 = annihilate_mask.reshape(1, inner).astype(jnp.int32)
    else:
        feat = int(x.shape[-1])
        rows = x.size // max(feat, 1)
        x2 = x.reshape(rows, feat)
        # TODO(synk): an int8/bool mask would cut mask HBM traffic further on
        # this full-mask path; int32 keeps block layouts trivially legal.
        m2 = (jnp.broadcast_to(annihilate_mask.reshape(aligned), x.shape)
              .astype(jnp.int32).reshape(rows, feat))

    out2 = _masked_fill_2d(x2, m2, row_broadcast=row_broadcast)
    return out2.reshape(orig_shape)


def _ref_forward(x, mask, p, training):
    """Pure-JAX reference of LogDropoutM.forward."""
    if not (training and p > 0 and mask is not None):
        return x
    aligned = (1,) * (x.ndim - mask.ndim) + tuple(mask.shape)
    m = jnp.broadcast_to(mask.reshape(aligned), x.shape)
    return jnp.where(m, jnp.array(-jnp.inf, x.dtype), x)


if __name__ == "__main__":
    key = jax.random.PRNGKey(0)
    kx, k1, k2, k3, k4 = jax.random.split(key, 5)

    B, S, F = 2, 8, 128  # small, lane-dense last dim
    x = jax.random.normal(kx, (B, S, F), dtype=jnp.float32)
    p = 0.5

    mask_feat = jax.random.bernoulli(k1, 0.3, (F,))        # broadcast over (B, S)
    mask_sf = jax.random.bernoulli(k2, 0.3, (S, F))        # broadcast over B
    mask_full = jax.random.bernoulli(k3, 0.3, (B, S, F))   # elementwise
    mask_s1 = jax.random.bernoulli(k4, 0.3, (S, 1))        # internal broadcast dim

    for m in (mask_feat, mask_sf, mask_full, mask_s1):
        y = jax.block_until_ready(log_dropout_m(x, m, p=p, training=True))
        r = _ref_forward(x, m, p, True)
        assert y.shape == x.shape and y.dtype == x.dtype
        assert bool(jnp.array_equal(y, r)), f"mismatch for mask shape {m.shape}"

    # Identity branches: no mask / eval mode / p == 0.
    y_nomask = jax.block_until_ready(log_dropout_m(x, None, p=p, training=True))
    y_eval = jax.block_until_ready(log_dropout_m(x, mask_feat, p=p, training=False))
    y_p0 = jax.block_until_ready(log_dropout_m(x, mask_feat, p=0.0, training=True))
    assert bool(jnp.array_equal(y_nomask, x))
    assert bool(jnp.array_equal(y_eval, x))
    assert bool(jnp.array_equal(y_p0, x))

    print("KERNEL_OK")
</pallas_src>

<mosaic_0001>
module attributes {stable_mosaic.version = 11 : i64} {
  func.func @_masked_fill_kernel(%arg0: i32, %arg1: memref<16x128xf32, #tpu.memory_space<vmem>>, %arg2: memref<1x128xi32, #tpu.memory_space<vmem>>, %arg3: memref<16x128xf32, #tpu.memory_space<vmem>>) attributes {dimension_semantics = [#tpu.dimension_semantics<parallel>], iteration_bounds = array<i64: 1>, scalar_prefetch = 0 : i64, scratch_operands = 0 : i64, tpu.core_type = #tpu.core_type<tc>, window_params = [{transform_indices = @transform_0, window_bounds = array<i64: 16, 128>}, {pipeline_mode = #tpu.pipeline_mode<synchronous>, transform_indices = @transform_1, window_bounds = array<i64: 1, 128>}, {transform_indices = @transform_2, window_bounds = array<i64: 16, 128>}]} {
    %c0 = arith.constant 0 : index
    %c0_0 = arith.constant 0 : index
    %0 = vector.load %arg2[%c0, %c0_0] : memref<1x128xi32, #tpu.memory_space<vmem>>, vector<1x128xi32>
    %c0_i32 = arith.constant 0 : i32
    %1 = vector.broadcast %c0_i32 : i32 to vector<1x128xi32>
    %2 = arith.cmpi ne, %0, %1 : vector<1x128xi32>
    %c0_1 = arith.constant 0 : index
    %c0_2 = arith.constant 0 : index
    %3 = vector.load %arg1[%c0_1, %c0_2] : memref<16x128xf32, #tpu.memory_space<vmem>>, vector<16x128xf32>
    %cst = arith.constant 0xFF800000 : f32
    %4 = vector.shape_cast %2 : vector<1x128xi1> to vector<1x128xi1>
    %5 = vector.broadcast %4 : vector<1x128xi1> to vector<16x128xi1>
    %6 = vector.broadcast %cst : f32 to vector<16x128xf32>
    %7 = arith.select %5, %6, %3 : vector<16x128xi1>, vector<16x128xf32>
    %c0_3 = arith.constant 0 : index
    %c0_4 = arith.constant 0 : index
    %8 = vector.load %arg3[%c0_3, %c0_4] : memref<16x128xf32, #tpu.memory_space<vmem>>, vector<16x128xf32>
    tpu.vector_store %arg3[%c0_3, %c0_4], %7 {strides = array<i32>} : memref<16x128xf32, #tpu.memory_space<vmem>>, vector<16x128xf32>,
    return
  }
  func.func @transform_0(%arg0: i32) -> (i32, i32) {
    %c0_i32 = arith.constant 0 : i32
    %c0_i32_0 = arith.constant 0 : i32
    return %arg0, %c0_i32 : i32, i32
  }
  func.func @transform_1(%arg0: i32) -> (i32, i32) {
    %c0_i32 = arith.constant 0 : i32
    %c0_i32_0 = arith.constant 0 : i32
    %c0_i32_1 = arith.constant 0 : i32
    return %c0_i32, %c0_i32_0 : i32, i32
  }
  func.func @transform_2(%arg0: i32) -> (i32, i32) {
    %c0_i32 = arith.constant 0 : i32
    %c0_i32_0 = arith.constant 0 : i32
    return %arg0, %c0_i32 : i32, i32
  }
}

</mosaic_0001>

<llo_original>
// kernel: tpu_custom_call.1
$region0: #{tpu_custom_call.1}
  #allocation0 [shape = 'u32[]', space=smem, size = 0x4, offset = 0x4, fixed_abs, tag = 'smem constant byte address 0x4 - core index']
  #allocation1 [shape = 'u32[144,128]{1,0:T(1,128)}', space=vmem, size = 0x12000, scoped, tag = 'internal scratch']
  %s0 = inlined_call_operand.hbm [shape: f32[16,128], index: 0, kind: input, shape index: {}]
  %s1 = inlined_call_operand.vmem [shape: s32[1,128], index: 1, kind: input, shape index: {}]
  %s2 = inlined_call_operand.hbm [shape: f32[16,128], index: 2, kind: output, shape index: {}]
  %s3 = sld [smem:[#allocation0]]
  $region22: #{tpu_custom_call.1} parent=0
    _
  %s5 = ssub.s32 1, %s3
  %s6 = scalar_select 0, %s5, %s3
  $region1: #{tpu_custom_call.1} parent=0
    #allocation2 [shape = 'u8[8192]{0}', space=vmem, size = 0x2000, scoped, tag = 'input window, operand 0, single buffered']
    #allocation3 [shape = 's32[1]{0}', space=sflag, size = 0x4, scoped, tag = 'scoped memory for tpu_custom_call.1']
    #allocation4 [shape = 's32[1]{0}', space=sflag, size = 0x4, scoped, tag = 'scoped memory for tpu_custom_call.1']
    #allocation5 [shape = 'u8[8192]{0}', space=vmem, size = 0x2000, scoped, tag = 'output window, operand 0, single buffered']
    %7 = vsyncpa [#allocation3], 0
    %8 = vsyncpa [#allocation4], 0
    // Predicated region
    $region2: #{tpu_custom_call.1} parent=1 // pred_check
      _
    $region3: #{tpu_custom_call.1} parent=1 // pred_check_branch
      %10 = sbr.rel (0) target = $region5
    $region4: #{tpu_custom_call.1} parent=1 // pred_region
      %s12 = ssub.s32 256, 256
      %13 = vsyncadd [#allocation3], %s12
      %s14 = sshll.u32 [#allocation2], 4
      %s15 = int_to_ptr.vmem [resolvable:$true] %s14
      %20 = dma.hbm_to_vmem [thread:$0]  %s0, 256, %s15, [#allocation3], 128, 128, 8
    $region5: #{tpu_custom_call.1} parent=1 // pred_fallthru
      _
    // Predicated region
    $region6: #{tpu_custom_call.1} parent=1 // pred_check
      _
    $region7: #{tpu_custom_call.1} parent=1 // pred_check_branch
      %22 = sbr.rel (0) target = $region9
    $region8: #{tpu_custom_call.1} parent=1 // pred_region
      _
    $region9: #{tpu_custom_call.1} parent=1 // pred_fallthru
      _
    // Predicated region
    $region10: #{tpu_custom_call.1} parent=1 // pred_check
      _
    $region11: #{tpu_custom_call.1} parent=1 // pred_check_branch
      %24 = sbr.rel (0) target = $region13
    $region12: #{tpu_custom_call.1} parent=1 // pred_region
      %25 = dma.done [#allocation3], 256
    $region13: #{tpu_custom_call.1} parent=1 // pred_fallthru
      _
    %v26 = vld [vmem:[%s1] sm:$0x1]
    %vm27 = vcmp.ne.s32.totalorder %v26, 0
    %v28 = vld [vmem:[#allocation2] sm:$0xff]
    %v29 = vld [vmem:[#allocation2 + $0x8] sm:$0xff]
    %v30 = vsel %vm27, 1, 0
    %v31 = vlaneseq
    %v32 = vshrl.u32 %v31, 7
    %v33 = vsub.s32 0, %v32
    %v34 = vrot.slane %v30, %v33
    %vm35 = vcmp.eq.s32.totalorder %v34, 1
    %v36 = vsel %vm35, -inf, %v28
    %v37 = vsel %vm35, -inf, %v29
    %38 = vst [vmem:[#allocation5] sm:$0xff] %v36
    %39 = vst [vmem:[#allocation5 + $0x8] sm:$0xff] %v37
    // Predicated region
    $region14: #{tpu_custom_call.1} parent=1 // pred_check
      _
    $region15: #{tpu_custom_call.1} parent=1 // pred_check_branch
      %41 = sbr.rel (0) target = $region17
    $region16: #{tpu_custom_call.1} parent=1 // pred_region
      %s43 = ssub.s32 256, 256
      %44 = vsyncadd [#allocation4], %s43
      %s45 = sshll.u32 [#allocation5], 4
      %s46 = int_to_ptr.vmem [resolvable:$true] %s45
      %51 = dma.vmem_to_hbm [thread:$0]  %s46, 256, %s2, [#allocation4], 128, 128, 8
    $region17: #{tpu_custom_call.1} parent=1 // pred_fallthru
      _
    // Predicated region
    $region18: #{tpu_custom_call.1} parent=1 // pred_check
      _
    $region19: #{tpu_custom_call.1} parent=1 // pred_check_branch
      %53 = sbr.rel (0) target = $region21
    $region20: #{tpu_custom_call.1} parent=1 // pred_region
      %54 = dma.done [#allocation4], 256
    $region21: #{tpu_custom_call.1} parent=1 // pred_fallthru
      _
    %55 = vsyncpa [#allocation3], 1
    %56 = vsyncpa [#allocation4], 1

</llo_original>
